<compile_context>
chip_gen: v6e
topology: v6e:2x2x1
jax: 0.10.0
libtpu: 0.0.40
codegen_flags: <defaults>
</compile_context>

<pallas_src>
import math
from functools import partial

import jax
import jax.numpy as jnp
from jax.experimental import pallas as pl
from jax.experimental.pallas import tpu as pltpu

VMEM_LIMIT = 64 * 1024 * 1024


# ------------------------------ tiling helpers ------------------------------

def _round_up(x, m):
    return (x + m - 1) // m * m


def _row_tile(m, target=256):
    target = max(8, (target // 8) * 8)
    if m <= target:
        return max(8, _round_up(m, 8))
    return target


def _col_tile(n, target=1024):
    if n <= target:
        return n
    for tn in range((target // 128) * 128, 0, -128):
        if n % tn == 0:
            return tn
    return n


def _pad_rows(x, mp):
    m = x.shape[0]
    return x if m == mp else jnp.pad(x, ((0, mp - m), (0, 0)))


# ----------------------------- Pallas kernels ------------------------------

def _linear_kernel(x_ref, w_ref, b_ref, o_ref, *, activation):
    y = jnp.dot(x_ref[...], w_ref[...], preferred_element_type=jnp.float32)
    y = y + b_ref[...]
    if activation == "gelu":            # exact (erf) GELU, as in BERT
        y = 0.5 * y * (1.0 + jax.lax.erf(y * (1.0 / math.sqrt(2.0))))
    elif activation == "tanh":
        y = jnp.tanh(y)
    o_ref[...] = y.astype(o_ref.dtype)


def linear(x, w, b, activation="none", out_dtype=jnp.bfloat16,
           tm_target=256, tn_target=1024):
    """y = act(x @ w + b).  x:[M,K] bf16, w:[K,N] bf16, b:[N] f32 -> [M,N]."""
    M, K = x.shape
    N = w.shape[1]
    tm = _row_tile(M, tm_target)
    Mp = _round_up(M, tm)
    tn = _col_tile(N, tn_target)
    out = pl.pallas_call(
        partial(_linear_kernel, activation=activation),
        out_shape=jax.ShapeDtypeStruct((Mp, N), out_dtype),
        grid=(Mp // tm, N // tn),
        in_specs=[
            pl.BlockSpec((tm, K), lambda i, j: (i, 0)),
            pl.BlockSpec((K, tn), lambda i, j: (0, j)),
            pl.BlockSpec((1, tn), lambda i, j: (0, j)),
        ],
        out_specs=pl.BlockSpec((tm, tn), lambda i, j: (i, j)),
        compiler_params=pltpu.CompilerParams(
            dimension_semantics=("parallel", "parallel"),
            vmem_limit_bytes=VMEM_LIMIT),
    )(_pad_rows(x, Mp), w, b.reshape(1, N))
    return out[:M] if Mp != M else out


def _linear_add_ln_kernel(x_ref, w_ref, b_ref, r_ref, g_ref, bt_ref, o_ref,
                          *, eps):
    y = jnp.dot(x_ref[...], w_ref[...], preferred_element_type=jnp.float32)
    y = y + b_ref[...] + r_ref[...].astype(jnp.float32)
    mu = jnp.mean(y, axis=-1, keepdims=True)
    var = jnp.mean(jnp.square(y - mu), axis=-1, keepdims=True)
    y = (y - mu) * jax.lax.rsqrt(var + eps) * g_ref[...] + bt_ref[...]
    o_ref[...] = y.astype(o_ref.dtype)


def linear_add_layernorm(x, w, b, res, gamma, beta, eps=1e-12,
                         out_dtype=jnp.bfloat16, tm_target=256):
    """LayerNorm(x @ w + b + res) fused into one kernel (LN in the epilogue)."""
    M, K = x.shape
    N = w.shape[1]
    tm = _row_tile(M, tm_target)
    Mp = _round_up(M, tm)
    out = pl.pallas_call(
        partial(_linear_add_ln_kernel, eps=eps),
        out_shape=jax.ShapeDtypeStruct((Mp, N), out_dtype),
        grid=(Mp // tm,),
        in_specs=[
            pl.BlockSpec((tm, K), lambda i: (i, 0)),
            pl.BlockSpec((K, N), lambda i: (0, 0)),
            pl.BlockSpec((1, N), lambda i: (0, 0)),
            pl.BlockSpec((tm, N), lambda i: (i, 0)),
            pl.BlockSpec((1, N), lambda i: (0, 0)),
            pl.BlockSpec((1, N), lambda i: (0, 0)),
        ],
        out_specs=pl.BlockSpec((tm, N), lambda i: (i, 0)),
        compiler_params=pltpu.CompilerParams(
            dimension_semantics=("parallel",),
            vmem_limit_bytes=VMEM_LIMIT),
    )(_pad_rows(x, Mp), w, b.reshape(1, N), _pad_rows(res, Mp),
      gamma.reshape(1, N), beta.reshape(1, N))
    return out[:M] if Mp != M else out


def _ln_kernel(x_ref, g_ref, b_ref, o_ref, *, eps):
    x = x_ref[...].astype(jnp.float32)
    mu = jnp.mean(x, axis=-1, keepdims=True)
    var = jnp.mean(jnp.square(x - mu), axis=-1, keepdims=True)
    o_ref[...] = (((x - mu) * jax.lax.rsqrt(var + eps)) * g_ref[...]
                  + b_ref[...]).astype(o_ref.dtype)


def layernorm(x, gamma, beta, eps=1e-12, out_dtype=jnp.bfloat16,
              tm_target=256):
    """LayerNorm(x) over features (no residual, no zero tensor DMA'd)."""
    M, H = x.shape
    tm = _row_tile(M, tm_target)
    Mp = _round_up(M, tm)
    out = pl.pallas_call(
        partial(_ln_kernel, eps=eps),
        out_shape=jax.ShapeDtypeStruct((Mp, H), out_dtype),
        grid=(Mp // tm,),
        in_specs=[
            pl.BlockSpec((tm, H), lambda i: (i, 0)),
            pl.BlockSpec((1, H), lambda i: (0, 0)),
            pl.BlockSpec((1, H), lambda i: (0, 0)),
        ],
        out_specs=pl.BlockSpec((tm, H), lambda i: (i, 0)),
        compiler_params=pltpu.CompilerParams(
            dimension_semantics=("parallel",),
            vmem_limit_bytes=VMEM_LIMIT),
    )(_pad_rows(x, Mp), gamma.reshape(1, H), beta.reshape(1, H))
    return out[:M] if Mp != M else out


def _attention_kernel(qkv_ref, m_ref, o_ref, *, n_heads, head_dim, hidden):
    qkv = qkv_ref[...][0]                              # [S, 3H] bf16
    bias = (1.0 - m_ref[...]) * (-10000.0)             # [1, S] additive key mask
    outs = []
    for h in range(n_heads):                           # static unroll over heads
        lo = h * head_dim
        q = qkv[:, lo:lo + head_dim]                   # 1/sqrt(D) folded into Wq
        k = qkv[:, hidden + lo:hidden + lo + head_dim]
        v = qkv[:, 2 * hidden + lo:2 * hidden + lo + head_dim]
        s = jnp.dot(q, k.T, preferred_element_type=jnp.float32)   # [S, S] f32
        s = s + bias
        s = s - jnp.max(s, axis=-1, keepdims=True)     # stable softmax
        p = jnp.exp(s)
        p = p * pl.reciprocal(jnp.sum(p, axis=-1, keepdims=True), approx=True)
        outs.append(jnp.dot(p.astype(qkv.dtype), v,
                            preferred_element_type=jnp.float32))
    ctx = jnp.concatenate(outs, axis=-1)               # lane-dense [S, H]
    o_ref[...] = ctx[None].astype(o_ref.dtype)


def attention(qkv, maskf, n_heads):
    """qkv:[B,S,3H] bf16 (heads packed on lanes), maskf:[B,S] -> [B,S,H] bf16."""
    B, S, H3 = qkv.shape
    H = H3 // 3
    # TODO(synk): for S >= 1024 tile the query axis with an online softmax
    # accumulator instead of materializing the full [S, S] score block.
    return pl.pallas_call(
        partial(_attention_kernel, n_heads=n_heads, head_dim=H // n_heads,
                hidden=H),
        out_shape=jax.ShapeDtypeStruct((B, S, H), jnp.bfloat16),
        grid=(B,),
        in_specs=[
            pl.BlockSpec((1, S, H3), lambda b: (b, 0, 0)),
            pl.BlockSpec((1, S), lambda b: (b, 0)),
        ],
        out_specs=pl.BlockSpec((1, S, H), lambda b: (b, 0, 0)),
        compiler_params=pltpu.CompilerParams(
            dimension_semantics=("parallel",),
            vmem_limit_bytes=VMEM_LIMIT),
    )(qkv, maskf)


def _pool_fc_kernel(cls_ref, pw_ref, pb_ref, fw_ref, fb_ref, o_ref):
    pooled = jnp.tanh(
        jnp.dot(cls_ref[...], pw_ref[...], preferred_element_type=jnp.float32)
        + pb_ref[...])
    logits = jnp.dot(pooled.astype(fw_ref.dtype), fw_ref[...],
                     preferred_element_type=jnp.float32) + fb_ref[...]
    o_ref[...] = logits


def pooler_fc(cls, pool_w, pool_b, fc_w, fc_b):
    """tanh(cls @ Wp + bp) @ Wfc + bfc, fused in one tiny kernel."""
    B, H = cls.shape
    O = fc_w.shape[1]
    return pl.pallas_call(
        _pool_fc_kernel,
        out_shape=jax.ShapeDtypeStruct((B, O), jnp.float32),
        grid=(1,),
        in_specs=[
            pl.BlockSpec((B, H), lambda i: (0, 0)),
            pl.BlockSpec((H, H), lambda i: (0, 0)),
            pl.BlockSpec((1, H), lambda i: (0, 0)),
            pl.BlockSpec((H, O), lambda i: (0, 0)),
            pl.BlockSpec((1, O), lambda i: (0, 0)),
        ],
        out_specs=pl.BlockSpec((B, O), lambda i: (0, 0)),
        compiler_params=pltpu.CompilerParams(
            dimension_semantics=("parallel",)),
    )(cls, pool_w, pool_b.reshape(1, H), fc_w, fc_b.reshape(1, O))


# --------------------------- parameters (synthetic) -------------------------

def init_params(key, cfg):
    H, I, V = cfg["hidden"], cfg["intermediate"], cfg["vocab"]
    P, L, O = cfg["max_pos"], cfg["layers"], cfg["output_size"]
    keys = iter(jax.random.split(key, 8 + 8 * L))

    def nrm(shape):
        return 0.02 * jax.random.normal(next(keys), shape, dtype=jnp.float32)

    def zeros(n):
        return jnp.zeros((n,), jnp.float32)

    def ones(n):
        return jnp.ones((n,), jnp.float32)

    params = {
        "word_emb": nrm((V, H)),
        "pos_emb": nrm((P, H)),
        "type_emb": nrm((2, H)),
        "emb_ln_g": ones(H), "emb_ln_b": zeros(H),
        "layers": [],
        "pool_w": nrm((H, H)), "pool_b": zeros(H),     # BERT pooler (dense+tanh)
        "fc_w": nrm((H, O)),   "fc_b": zeros(O),       # BERTClass.fc
    }
    for _ in range(L):
        params["layers"].append({
            "wq": nrm((H, H)), "bq": zeros(H),
            "wk": nrm((H, H)), "bk": zeros(H),
            "wv": nrm((H, H)), "bv": zeros(H),
            "wo": nrm((H, H)), "bo": zeros(H),
            "ln1_g": ones(H), "ln1_b": zeros(H),
            "w1": nrm((H, I)), "b1": zeros(I),
            "w2": nrm((I, H)), "b2": zeros(H),
            "ln2_g": ones(H), "ln2_b": zeros(H),
        })
    return params


def prepare_params(raw, cfg):
    """Fuse QKV weights, fold 1/sqrt(head_dim) into Wq/bq, cast weights to bf16."""
    H, nH = cfg["hidden"], cfg["heads"]
    scale = 1.0 / math.sqrt(H // nH)
    p = {
        "word_emb": raw["word_emb"],
        "pos_emb": raw["pos_emb"],
        "type_emb": raw["type_emb"],
        "emb_ln_g": raw["emb_ln_g"], "emb_ln_b": raw["emb_ln_b"],
        "pool_w": raw["pool_w"].astype(jnp.bfloat16), "pool_b": raw["pool_b"],
        "fc_w": raw["fc_w"].astype(jnp.bfloat16), "fc_b": raw["fc_b"],
        "layers": [],
    }
    for lyr in raw["layers"]:
        wqkv = jnp.concatenate([lyr["wq"] * scale, lyr["wk"], lyr["wv"]], axis=1)
        bqkv = jnp.concatenate([lyr["bq"] * scale, lyr["bk"], lyr["bv"]])
        p["layers"].append({
            "wqkv": wqkv.astype(jnp.bfloat16), "bqkv": bqkv,
            "wo": lyr["wo"].astype(jnp.bfloat16), "bo": lyr["bo"],
            "ln1_g": lyr["ln1_g"], "ln1_b": lyr["ln1_b"],
            "w1": lyr["w1"].astype(jnp.bfloat16), "b1": lyr["b1"],
            "w2": lyr["w2"].astype(jnp.bfloat16), "b2": lyr["b2"],
            "ln2_g": lyr["ln2_g"], "ln2_b": lyr["ln2_b"],
        })
    return p


# ------------------------------- forward pass --------------------------------

def bert_class_forward(params, ids, mask, cfg):
    B, S = ids.shape
    H, nH = cfg["hidden"], cfg["heads"]

    # Embeddings (gather is glue in plain JAX; LN runs in Pallas, no-residual).
    word = jnp.take(params["word_emb"], ids, axis=0)            # [B, S, H]
    pos = params["pos_emb"][:S][None, :, :]                     # [1, S, H]
    tok = params["type_emb"][0][None, None, :]                  # token_type_ids=0
    emb = (word + pos + tok).reshape(B * S, H).astype(jnp.float32)
    x = layernorm(emb, params["emb_ln_g"], params["emb_ln_b"])  # [B*S, H] bf16
    # TODO(synk): dropout layers are treated as identity (eval-mode semantics).

    maskf = mask.astype(jnp.float32)                            # [B, S]

    for layer in params["layers"]:
        # Fused QKV projection: x read once -> [B*S, 3H] bf16.
        qkv = linear(x, layer["wqkv"], layer["bqkv"])
        # Attention: per-batch block over all heads, lane-dense [S, H] output.
        ctx = attention(qkv.reshape(B, S, 3 * H), maskf, nH)    # [B, S, H]
        ctx = ctx.reshape(B * S, H)
        # Output projection + residual + LayerNorm fused.
        x = linear_add_layernorm(ctx, layer["wo"], layer["bo"], x,
                                 layer["ln1_g"], layer["ln1_b"])
        # FFN: w1 (+exact GELU), then w2 + residual + LayerNorm fused.
        h = linear(x, layer["w1"], layer["b1"], activation="gelu")
        x = linear_add_layernorm(h, layer["w2"], layer["b2"], x,
                                 layer["ln2_g"], layer["ln2_b"])

    # Pooler (tanh(dense(hidden[:, 0]))) fused with BERTClass.fc; dropout = id.
    cls = x.reshape(B, S, H)[:, 0, :]                           # [B, H] bf16
    logits = pooler_fc(cls, params["pool_w"], params["pool_b"],
                       params["fc_w"], params["fc_b"])          # [B, O] f32
    return logits


# ----------------------------------- main ------------------------------------

if __name__ == "__main__":
    cfg = dict(vocab=100, hidden=32, heads=4, layers=2, intermediate=64,
               max_pos=16, output_size=4)
    B, S = 2, 8

    root = jax.random.PRNGKey(0)
    k_params, k_ids = jax.random.split(root)
    params = prepare_params(init_params(k_params, cfg), cfg)

    ids = jax.random.randint(k_ids, (B, S), 0, cfg["vocab"], dtype=jnp.int32)
    mask = jnp.ones((B, S), dtype=jnp.int32)                    # all tokens valid

    logits = bert_class_forward(params, ids, mask, cfg)
    jax.block_until_ready(logits)
    assert logits.shape == (B, cfg["output_size"])
    print("KERNEL_OK")
</pallas_src>

<mosaic_0001>
module attributes {stable_mosaic.version = 11 : i64} {
  func.func @_ln_kernel(%arg0: i32, %arg1: memref<16x32xf32, #tpu.memory_space<vmem>>, %arg2: memref<1x32xf32, #tpu.memory_space<vmem>>, %arg3: memref<1x32xf32, #tpu.memory_space<vmem>>, %arg4: memref<16x32xbf16, #tpu.memory_space<vmem>>) attributes {dimension_semantics = [#tpu.dimension_semantics<parallel>], iteration_bounds = array<i64: 1>, scalar_prefetch = 0 : i64, scratch_operands = 0 : i64, tpu.core_type = #tpu.core_type<tc>, window_params = [{transform_indices = @transform_0, window_bounds = array<i64: 16, 32>}, {pipeline_mode = #tpu.pipeline_mode<synchronous>, transform_indices = @transform_1, window_bounds = array<i64: 1, 32>}, {pipeline_mode = #tpu.pipeline_mode<synchronous>, transform_indices = @transform_2, window_bounds = array<i64: 1, 32>}, {transform_indices = @transform_3, window_bounds = array<i64: 16, 32>}]} {
    %c0 = arith.constant 0 : index
    %c0_0 = arith.constant 0 : index
    %0 = vector.load %arg1[%c0, %c0_0] : memref<16x32xf32, #tpu.memory_space<vmem>>, vector<16x32xf32>
    %cst = arith.constant dense<0.000000e+00> : vector<16xf32>
    %1 = vector.multi_reduction <add>, %0, %cst [1] : vector<16x32xf32> to vector<16xf32>
    %2 = vector.shape_cast %1 : vector<16xf32> to vector<16x1xf32>
    %cst_1 = arith.constant 3.200000e+01 : f32
    %3 = vector.broadcast %cst_1 : f32 to vector<16x1xf32>
    %4 = arith.divf %2, %3 : vector<16x1xf32>
    %5 = vector.broadcast %4 : vector<16x1xf32> to vector<16x32xf32>
    %6 = arith.subf %0, %5 : vector<16x32xf32>
    %7 = arith.mulf %6, %6 : vector<16x32xf32>
    %cst_2 = arith.constant dense<0.000000e+00> : vector<16xf32>
    %8 = vector.multi_reduction <add>, %7, %cst_2 [1] : vector<16x32xf32> to vector<16xf32>
    %9 = vector.shape_cast %8 : vector<16xf32> to vector<16x1xf32>
    %cst_3 = arith.constant 3.200000e+01 : f32
    %10 = vector.broadcast %cst_3 : f32 to vector<16x1xf32>
    %11 = arith.divf %9, %10 : vector<16x1xf32>
    %12 = vector.broadcast %4 : vector<16x1xf32> to vector<16x32xf32>
    %13 = arith.subf %0, %12 : vector<16x32xf32>
    %cst_4 = arith.constant 9.99999996E-13 : f32
    %14 = vector.broadcast %cst_4 : f32 to vector<16x1xf32>
    %15 = arith.addf %11, %14 : vector<16x1xf32>
    %16 = math.rsqrt %15 : vector<16x1xf32>
    %17 = vector.broadcast %16 : vector<16x1xf32> to vector<16x32xf32>
    %18 = arith.mulf %13, %17 : vector<16x32xf32>
    %c0_5 = arith.constant 0 : index
    %c0_6 = arith.constant 0 : index
    %19 = vector.load %arg2[%c0_5, %c0_6] : memref<1x32xf32, #tpu.memory_space<vmem>>, vector<1x32xf32>
    %20 = vector.broadcast %19 : vector<1x32xf32> to vector<16x32xf32>
    %21 = arith.mulf %18, %20 : vector<16x32xf32>
    %c0_7 = arith.constant 0 : index
    %c0_8 = arith.constant 0 : index
    %22 = vector.load %arg3[%c0_7, %c0_8] : memref<1x32xf32, #tpu.memory_space<vmem>>, vector<1x32xf32>
    %23 = vector.broadcast %22 : vector<1x32xf32> to vector<16x32xf32>
    %24 = arith.addf %21, %23 : vector<16x32xf32>
    %25 = arith.truncf %24 : vector<16x32xf32> to vector<16x32xbf16>
    %c0_9 = arith.constant 0 : index
    %c0_10 = arith.constant 0 : index
    %26 = vector.load %arg4[%c0_9, %c0_10] : memref<16x32xbf16, #tpu.memory_space<vmem>>, vector<16x32xbf16>
    tpu.vector_store %arg4[%c0_9, %c0_10], %25 {strides = array<i32>} : memref<16x32xbf16, #tpu.memory_space<vmem>>, vector<16x32xbf16>,
    return
  }
  func.func @transform_0(%arg0: i32) -> (i32, i32) {
    %c0_i32 = arith.constant 0 : i32
    %c0_i32_0 = arith.constant 0 : i32
    return %arg0, %c0_i32 : i32, i32
  }
  func.func @transform_1(%arg0: i32) -> (i32, i32) {
    %c0_i32 = arith.constant 0 : i32
    %c0_i32_0 = arith.constant 0 : i32
    %c0_i32_1 = arith.constant 0 : i32
    return %c0_i32, %c0_i32_0 : i32, i32
  }
  func.func @transform_2(%arg0: i32) -> (i32, i32) {
    %c0_i32 = arith.constant 0 : i32
    %c0_i32_0 = arith.constant 0 : i32
    %c0_i32_1 = arith.constant 0 : i32
    return %c0_i32, %c0_i32_0 : i32, i32
  }
  func.func @transform_3(%arg0: i32) -> (i32, i32) {
    %c0_i32 = arith.constant 0 : i32
    %c0_i32_0 = arith.constant 0 : i32
    return %arg0, %c0_i32 : i32, i32
  }
}

</mosaic_0001>

<llo_original>
// kernel: tpu_custom_call.1
$region0: #{tpu_custom_call.1}
  #allocation0 [shape = 'u32[]', space=smem, size = 0x4, offset = 0x4, fixed_abs, tag = 'smem constant byte address 0x4 - core index']
  #allocation1 [shape = 'u32[144,128]{1,0:T(1,128)}', space=vmem, size = 0x12000, scoped, tag = 'internal scratch']
  %s0 = inlined_call_operand.hbm [shape: f32[16,32], index: 0, kind: input, shape index: {}]
  %s1 = inlined_call_operand.vmem [shape: f32[1,32], index: 1, kind: input, shape index: {}]
  %s2 = inlined_call_operand.vmem [shape: f32[1,32], index: 2, kind: input, shape index: {}]
  %s3 = inlined_call_operand.hbm [shape: bf16[16,32], index: 3, kind: output, shape index: {}]
  %s4 = sld [smem:[#allocation0]]
  $region26: #{tpu_custom_call.1} parent=0
    _
  %s6 = ssub.s32 1, %s4
  %s7 = scalar_select 0, %s6, %s4
  $region1: #{tpu_custom_call.1} parent=0
    #allocation2 [shape = 'u8[8192]{0}', space=vmem, size = 0x2000, scoped, tag = 'input window, operand 0, single buffered']
    #allocation3 [shape = 's32[1]{0}', space=sflag, size = 0x4, scoped, tag = 'scoped memory for tpu_custom_call.1']
    #allocation4 [shape = 's32[1]{0}', space=sflag, size = 0x4, scoped, tag = 'scoped memory for tpu_custom_call.1']
    #allocation5 [shape = 'u8[4096]{0}', space=vmem, size = 0x1000, scoped, tag = 'output window, operand 0, single buffered']
    %8 = vsyncpa [#allocation3], 0
    %9 = vsyncpa [#allocation4], 0
    // Predicated region
    $region2: #{tpu_custom_call.1} parent=1 // pred_check
      _
    $region3: #{tpu_custom_call.1} parent=1 // pred_check_branch
      %11 = sbr.rel (0) target = $region5
    $region4: #{tpu_custom_call.1} parent=1 // pred_region
      %s13 = ssub.s32 256, 256
      %14 = vsyncadd [#allocation3], %s13
      %s15 = sshll.u32 [#allocation2], 4
      %s16 = int_to_ptr.vmem [resolvable:$true] %s15
      %21 = dma.hbm_to_vmem [thread:$0]  %s0, 256, %s16, [#allocation3], 128, 128, 8
    $region5: #{tpu_custom_call.1} parent=1 // pred_fallthru
      _
    // Predicated region
    $region6: #{tpu_custom_call.1} parent=1 // pred_check
      _
    $region7: #{tpu_custom_call.1} parent=1 // pred_check_branch
      %23 = sbr.rel (0) target = $region9
    $region8: #{tpu_custom_call.1} parent=1 // pred_region
      _
    $region9: #{tpu_custom_call.1} parent=1 // pred_fallthru
      _
    // Predicated region
    $region10: #{tpu_custom_call.1} parent=1 // pred_check
      _
    $region11: #{tpu_custom_call.1} parent=1 // pred_check_branch
      %25 = sbr.rel (0) target = $region13
    $region12: #{tpu_custom_call.1} parent=1 // pred_region
      _
    $region13: #{tpu_custom_call.1} parent=1 // pred_fallthru
      _
    // Predicated region
    $region14: #{tpu_custom_call.1} parent=1 // pred_check
      _
    $region15: #{tpu_custom_call.1} parent=1 // pred_check_branch
      %27 = sbr.rel (0) target = $region17
    $region16: #{tpu_custom_call.1} parent=1 // pred_region
      %28 = dma.done [#allocation3], 256
    $region17: #{tpu_custom_call.1} parent=1 // pred_fallthru
      _
    %v29 = vld [vmem:[#allocation2] sm:$0xff]
    %v30 = vld [vmem:[#allocation2 + $0x8] sm:$0xff]
    %vm31 = vcmask 261120
    %v32 = vsel %vm31, %v29, 0.0
    %33 = vadd.xlane.f32.xlu0 %v32
    %v34 = vpop.xlane.xlu0 %33
    %v35 = vsel %vm31, %v30, 0.0
    %36 = vadd.xlane.f32.xlu0 %v35
    %v37 = vpop.xlane.xlu0 %36
    %v38 = vrcp.pop 32.0
    %v39 = vmul.f32 %v34, %v38
    %v40 = vmul.f32 %v37, %v38
    %v41 = vsub.f32 %v29, %v39
    %v42 = vsub.f32 %v30, %v40
    %v43 = vmul.f32 %v41, %v41
    %v44 = vmul.f32 %v42, %v42
    %v45 = vsel %vm31, %v43, 0.0
    %46 = vadd.xlane.f32.xlu0 %v45
    %v47 = vpop.xlane.xlu0 %46
    %v48 = vsel %vm31, %v44, 0.0
    %49 = vadd.xlane.f32.xlu0 %v48
    %v50 = vpop.xlane.xlu0 %49
    %v51 = vmul.f32 %v47, %v38
    %v52 = vmul.f32 %v50, %v38
    %v53 = vadd.f32 %v51, 1e-12
    %v54 = vadd.f32 %v52, 1e-12
    %v55 = vrsqrt.pop %v53
    %v56 = vrsqrt.pop %v54
    %v57 = vmul.f32 %v41, %v55
    %v58 = vmul.f32 %v42, %v56
    %v59 = vld [vmem:[%s1] sm:$0x1]
    %v61 = vlaneseq
    %v62 = vshrl.u32 %v61, 7
    %v63 = vsub.s32 0, %v62
    %v64 = vrot.slane %v59, %v63
    %v66 = vmul.f32 %v57, %v64
    %v67 = vmul.f32 %v58, %v64
    %v68 = vld [vmem:[%s2] sm:$0x1]
    %v70 = vlaneseq
    %v71 = vshrl.u32 %v70, 7
    %v72 = vsub.s32 0, %v71
    %v73 = vrot.slane %v68, %v72
    %v75 = vadd.f32 %v66, %v73
    %v76 = vadd.f32 %v67, %v73
    %v77 = vpack.c.bf16 %v76, %v75
    %v79 = vunpack.c.l.b16 %v77
    %v80 = vunpack.c.h.b16 %v77
    %v81 = vpack.c.b16 %v79, %v79
    %v82 = vpack.c.b16 %v80, %v80
    %vm85 = vcmask 257024
    %86 = vst.msk [vmem:[#allocation5] sm:$0xf] %vm85, %v81
    %87 = vst.msk [vmem:[#allocation5 + $0x4] sm:$0xf] %vm85, %v82
    // Predicated region
    $region18: #{tpu_custom_call.1} parent=1 // pred_check
      _
    $region19: #{tpu_custom_call.1} parent=1 // pred_check_branch
      %89 = sbr.rel (0) target = $region21
    $region20: #{tpu_custom_call.1} parent=1 // pred_region
      %s91 = ssub.s32 128, 128
      %92 = vsyncadd [#allocation4], %s91
      %s93 = sshll.u32 [#allocation5], 4
      %s94 = int_to_ptr.vmem [resolvable:$true] %s93
      %99 = dma.vmem_to_hbm [thread:$0]  %s94, 128, %s3, [#allocation4], 64, 64, 4
    $region21: #{tpu_custom_call.1} parent=1 // pred_fallthru
      _
    // Predicated region
    $region22: #{tpu_custom_call.1} parent=1 // pred_check
      _
    $region23: #{tpu_custom_call.1} parent=1 // pred_check_branch
      %101 = sbr.rel (0) target = $region25
    $region24: #{tpu_custom_call.1} parent=1 // pred_region
      %102 = dma.done [#allocation4], 128
    $region25: #{tpu_custom_call.1} parent=1 // pred_fallthru
      _
    %103 = vsyncpa [#allocation3], 1
    %104 = vsyncpa [#allocation4], 1

</llo_original>
